<compile_context>
chip_gen: v7x
topology: tpu7x:2x2x1
jax: 0.10.0
libtpu: 0.0.40
codegen_flags: <defaults>
</compile_context>

<pallas_src>
from functools import partial

import jax
import jax.numpy as jnp
from jax.experimental import pallas as pl
from jax.experimental.pallas import tpu as pltpu


def _ann_linear_kernel(x_ref, wt_ref, b_ref, o_ref):
    """y = relu(x @ W^T + b) for one (tb, in_f) row-block, on the VPU."""
    x = x_ref[...].astype(jnp.float32)      # (tb, in_f)  natural layout
    wt = wt_ref[...].astype(jnp.float32)    # (in_f, out_f)
    b = b_ref[...].astype(jnp.float32)      # (1, out_f)
    in_f = wt.shape[0]

    # Unrolled broadcast multiply-add over the tiny contraction dim (in_f=4):
    # (tb,1) lane-broadcast * (1,out_f) sublane-broadcast -> (tb,out_f).
    acc = x[:, 0:1] * wt[0:1, :]
    for k in range(1, in_f):
        acc = acc + x[:, k:k + 1] * wt[k:k + 1, :]
    acc = acc + b                           # bias added once per tile
    o_ref[...] = jnp.maximum(acc, 0.0).astype(o_ref.dtype)


# Rows per grid step.  Double-buffered x (tb,4) + y (tb,3) blocks are lane-
# padded to 128 in VMEM -> ~2 KiB/row total, i.e. ~16 MiB at 8192 rows, well
# under the 32 MiB scoped-VMEM limit requested below on every generation
# (v7x has 64 MiB physical, v5e/v6e 128 MiB).
_BATCH_TILE_CAP = 8192


def _pick_batch_tile(batch: int) -> int:
    if batch <= _BATCH_TILE_CAP:
        return batch            # single full-extent block (exempt from /8 rule)
    return _BATCH_TILE_CAP      # multiple of 8/128; cdiv grid clips the tail


@partial(jax.jit, static_argnames=("batch_tile",))
def ann_linear_forward(x, weight, bias, *, batch_tile=None):
    """x: (B, in_f); weight: (out_f, in_f) torch layout; bias: (out_f,)."""
    B, in_f = x.shape
    out_f = weight.shape[0]

    tb = _pick_batch_tile(B) if batch_tile is None else min(batch_tile, B)

    # Tiny parameter re-layouts (12 + 3 elements): negligible, unlike the
    # removed x/y transposes.  Lets the kernel slice contiguous (1, out_f)
    # weight rows instead of gathering strided columns.
    w_t = weight.T.astype(jnp.float32)       # (in_f, out_f)
    b2 = bias.reshape(1, out_f).astype(jnp.float32)

    grid = (pl.cdiv(B, tb),)                 # boundary block clipped by Pallas

    return pl.pallas_call(
        _ann_linear_kernel,
        out_shape=jax.ShapeDtypeStruct((B, out_f), x.dtype),
        grid_spec=pltpu.PrefetchScalarGridSpec(
            num_scalar_prefetch=0,
            grid=grid,
            in_specs=[
                pl.BlockSpec((tb, in_f), lambda i: (i, 0)),      # x row-block
                pl.BlockSpec((in_f, out_f), lambda i: (0, 0)),   # W^T, resident
                pl.BlockSpec((1, out_f), lambda i: (0, 0)),      # bias, resident
            ],
            out_specs=pl.BlockSpec((tb, out_f), lambda i: (i, 0)),
        ),
        compiler_params=pltpu.CompilerParams(
            # Independent batch tiles -> shard grid steps across both v7x
            # TensorCores; harmless on v5e/v6e.
            dimension_semantics=("parallel",),
            # Explicit 32 MiB: matches the v6e/v7x default, raises v5e's 16 MiB.
            vmem_limit_bytes=32 * 1024 * 1024,
        ),
    )(x, w_t, b2)


if __name__ == "__main__":
    key = jax.random.PRNGKey(0)
    k_x, k_w, k_b, k_x2 = jax.random.split(key, 4)

    in_features, out_features = 4, 3

    # Deterministic parameter init mimicking nn.Linear default:
    # U(-1/sqrt(in_features), 1/sqrt(in_features)).
    bound = 1.0 / (in_features ** 0.5)
    weight = jax.random.uniform(
        k_w, (out_features, in_features), jnp.float32, -bound, bound)
    bias = jax.random.uniform(
        k_b, (out_features,), jnp.float32, -bound, bound)

    # Small batch consistent with the module's forward (single-block path).
    batch = 8
    x = jax.random.normal(k_x, (batch, in_features), jnp.float32)
    y = jax.block_until_ready(ann_linear_forward(x, weight, bias))
    y_ref = jnp.maximum(x @ weight.T + bias, 0.0)
    assert y.shape == (batch, out_features)
    assert jnp.allclose(y, y_ref, atol=1e-5, rtol=1e-5)

    # Ragged batch exercising the pipelined multi-step grid path with a
    # partial boundary block (tile=128 -> grid=(3,), last block half-valid).
    batch2 = 300
    x2 = jax.random.normal(k_x2, (batch2, in_features), jnp.float32)
    y2 = jax.block_until_ready(ann_linear_forward(x2, weight, bias,
                                                  batch_tile=128))
    y2_ref = jnp.maximum(x2 @ weight.T + bias, 0.0)
    assert y2.shape == (batch2, out_features)
    assert jnp.allclose(y2, y2_ref, atol=1e-5, rtol=1e-5)

    print("KERNEL_OK")
</pallas_src>

<mosaic_0001>
module attributes {stable_mosaic.version = 11 : i64} {
  func.func @_ann_linear_kernel(%arg0: i32, %arg1: memref<8x4xf32, #tpu.memory_space<vmem>>, %arg2: memref<4x3xf32, #tpu.memory_space<vmem>>, %arg3: memref<1x3xf32, #tpu.memory_space<vmem>>, %arg4: memref<8x3xf32, #tpu.memory_space<vmem>>) attributes {dimension_semantics = [#tpu.dimension_semantics<parallel>], iteration_bounds = array<i64: 1>, scalar_prefetch = 0 : i64, scratch_operands = 0 : i64, tpu.core_type = #tpu.core_type<tc>, window_params = [{transform_indices = @transform_0, window_bounds = array<i64: 8, 4>}, {pipeline_mode = #tpu.pipeline_mode<synchronous>, transform_indices = @transform_1, window_bounds = array<i64: 4, 3>}, {pipeline_mode = #tpu.pipeline_mode<synchronous>, transform_indices = @transform_2, window_bounds = array<i64: 1, 3>}, {transform_indices = @transform_3, window_bounds = array<i64: 8, 3>}]} {
    %c0 = arith.constant 0 : index
    %c0_0 = arith.constant 0 : index
    %0 = vector.load %arg1[%c0, %c0_0] : memref<8x4xf32, #tpu.memory_space<vmem>>, vector<8x4xf32>
    %c0_1 = arith.constant 0 : index
    %c0_2 = arith.constant 0 : index
    %1 = vector.load %arg2[%c0_1, %c0_2] : memref<4x3xf32, #tpu.memory_space<vmem>>, vector<4x3xf32>
    %c0_3 = arith.constant 0 : index
    %c0_4 = arith.constant 0 : index
    %2 = vector.load %arg3[%c0_3, %c0_4] : memref<1x3xf32, #tpu.memory_space<vmem>>, vector<1x3xf32>
    %3 = vector.extract_strided_slice %0 {offsets = [0, 0], sizes = [8, 1], strides = [1, 1]} : vector<8x4xf32> to vector<8x1xf32>
    %4 = vector.extract_strided_slice %1 {offsets = [0, 0], sizes = [1, 3], strides = [1, 1]} : vector<4x3xf32> to vector<1x3xf32>
    %5 = vector.broadcast %3 : vector<8x1xf32> to vector<8x3xf32>
    %6 = vector.broadcast %4 : vector<1x3xf32> to vector<8x3xf32>
    %7 = arith.mulf %5, %6 : vector<8x3xf32>
    %8 = vector.extract_strided_slice %0 {offsets = [0, 1], sizes = [8, 1], strides = [1, 1]} : vector<8x4xf32> to vector<8x1xf32>
    %9 = vector.extract_strided_slice %1 {offsets = [1, 0], sizes = [1, 3], strides = [1, 1]} : vector<4x3xf32> to vector<1x3xf32>
    %10 = vector.broadcast %8 : vector<8x1xf32> to vector<8x3xf32>
    %11 = vector.broadcast %9 : vector<1x3xf32> to vector<8x3xf32>
    %12 = arith.mulf %10, %11 : vector<8x3xf32>
    %13 = arith.addf %7, %12 : vector<8x3xf32>
    %14 = vector.extract_strided_slice %0 {offsets = [0, 2], sizes = [8, 1], strides = [1, 1]} : vector<8x4xf32> to vector<8x1xf32>
    %15 = vector.extract_strided_slice %1 {offsets = [2, 0], sizes = [1, 3], strides = [1, 1]} : vector<4x3xf32> to vector<1x3xf32>
    %16 = vector.broadcast %14 : vector<8x1xf32> to vector<8x3xf32>
    %17 = vector.broadcast %15 : vector<1x3xf32> to vector<8x3xf32>
    %18 = arith.mulf %16, %17 : vector<8x3xf32>
    %19 = arith.addf %13, %18 : vector<8x3xf32>
    %20 = vector.extract_strided_slice %0 {offsets = [0, 3], sizes = [8, 1], strides = [1, 1]} : vector<8x4xf32> to vector<8x1xf32>
    %21 = vector.extract_strided_slice %1 {offsets = [3, 0], sizes = [1, 3], strides = [1, 1]} : vector<4x3xf32> to vector<1x3xf32>
    %22 = vector.broadcast %20 : vector<8x1xf32> to vector<8x3xf32>
    %23 = vector.broadcast %21 : vector<1x3xf32> to vector<8x3xf32>
    %24 = arith.mulf %22, %23 : vector<8x3xf32>
    %25 = arith.addf %19, %24 : vector<8x3xf32>
    %26 = vector.broadcast %2 : vector<1x3xf32> to vector<8x3xf32>
    %27 = arith.addf %25, %26 : vector<8x3xf32>
    %cst = arith.constant 0.000000e+00 : f32
    %28 = vector.broadcast %cst : f32 to vector<8x3xf32>
    %29 = arith.maximumf %27, %28 : vector<8x3xf32>
    %c0_5 = arith.constant 0 : index
    %c0_6 = arith.constant 0 : index
    %30 = vector.load %arg4[%c0_5, %c0_6] : memref<8x3xf32, #tpu.memory_space<vmem>>, vector<8x3xf32>
    tpu.vector_store %arg4[%c0_5, %c0_6], %29 {strides = array<i32>} : memref<8x3xf32, #tpu.memory_space<vmem>>, vector<8x3xf32>,
    return
  }
  func.func @transform_0(%arg0: i32) -> (i32, i32) {
    %c0_i32 = arith.constant 0 : i32
    %c0_i32_0 = arith.constant 0 : i32
    return %arg0, %c0_i32 : i32, i32
  }
  func.func @transform_1(%arg0: i32) -> (i32, i32) {
    %c0_i32 = arith.constant 0 : i32
    %c0_i32_0 = arith.constant 0 : i32
    %c0_i32_1 = arith.constant 0 : i32
    return %c0_i32, %c0_i32_0 : i32, i32
  }
  func.func @transform_2(%arg0: i32) -> (i32, i32) {
    %c0_i32 = arith.constant 0 : i32
    %c0_i32_0 = arith.constant 0 : i32
    %c0_i32_1 = arith.constant 0 : i32
    return %c0_i32, %c0_i32_0 : i32, i32
  }
  func.func @transform_3(%arg0: i32) -> (i32, i32) {
    %c0_i32 = arith.constant 0 : i32
    %c0_i32_0 = arith.constant 0 : i32
    return %arg0, %c0_i32 : i32, i32
  }
}

</mosaic_0001>

<llo_original>
// kernel: ann_linear_forward.1
$region0: #{ann_linear_forward.1}
  #allocation0 [shape = 'u32[]', space=smem, size = 0x4, offset = 0x4, fixed_abs, tag = 'smem constant byte address 0x4 - core index']
  #allocation1 [shape = 'u32[144,128]{1,0:T(1,128)}', space=vmem, size = 0x12000, scoped, tag = 'internal scratch']
  %s0 = inlined_call_operand.vmem [shape: f32[8,4], index: 0, kind: input, shape index: {}]
  %s1 = inlined_call_operand.vmem [shape: f32[4,3], index: 1, kind: input, shape index: {}]
  %s2 = inlined_call_operand.vmem [shape: f32[1,3], index: 2, kind: input, shape index: {}]
  %s3 = inlined_call_operand.vmem [shape: f32[8,3], index: 3, kind: output, shape index: {}]
  %s4 = sld [smem:[#allocation0]]
  $region22: #{ann_linear_forward.1} parent=0
    _
  %s6 = ssub.s32 1, %s4
  %s7 = scalar_select 0, %s6, %s4
  // Predicated region
  $region2: #{ann_linear_forward.1} parent=0 // pred_check
    _
  $region3: #{ann_linear_forward.1} parent=0 // pred_check_branch
    %9 = sbr.rel (0) target = $region5
  $region4: #{ann_linear_forward.1} parent=0 // pred_region
    _
  $region5: #{ann_linear_forward.1} parent=0 // pred_fallthru
    _
  // Predicated region
  $region6: #{ann_linear_forward.1} parent=0 // pred_check
    _
  $region7: #{ann_linear_forward.1} parent=0 // pred_check_branch
    %11 = sbr.rel (0) target = $region9
  $region8: #{ann_linear_forward.1} parent=0 // pred_region
    _
  $region9: #{ann_linear_forward.1} parent=0 // pred_fallthru
    _
  // Predicated region
  $region10: #{ann_linear_forward.1} parent=0 // pred_check
    _
  $region11: #{ann_linear_forward.1} parent=0 // pred_check_branch
    %13 = sbr.rel (0) target = $region13
  $region12: #{ann_linear_forward.1} parent=0 // pred_region
    _
  $region13: #{ann_linear_forward.1} parent=0 // pred_fallthru
    _
  %v14 = vld [vmem:[%s0] sm:$0xff]
  %v15 = vld [vmem:[%s1] sm:$0xf]
  %v16 = vld [vmem:[%s2] sm:$0x1]
  %18 = vset.pattern.permute.xlu0 0
  %19 = vperm.xlu0 %18, %v14
  %v20 = vpop.permute.xlu0 %19
  %v22 = vlaneseq
  %v23 = vshrl.u32 %v22, 7
  %v24 = vsub.s32 0, %v23
  %v25 = vrot.slane %v15, %v24
  %v26 = vmul.f32 %v20, %v25
  %27 = vset.pattern.permute.xlu0 1
  %28 = vperm.xlu0 %27, %v14
  %v29 = vpop.permute.xlu0 %28
  %v31 = vlaneseq
  %v32 = vshrl.u32 %v31, 7
  %v33 = vsub.s32 1, %v32
  %v34 = vrot.slane %v15, %v33
  %v35 = vmul.f32 %v29, %v34
  %v36 = vadd.f32 %v26, %v35
  %37 = vset.pattern.permute.xlu0 2
  %38 = vperm.xlu0 %37, %v14
  %v39 = vpop.permute.xlu0 %38
  %v41 = vlaneseq
  %v42 = vshrl.u32 %v41, 7
  %v43 = vsub.s32 2, %v42
  %v44 = vrot.slane %v15, %v43
  %v45 = vmul.f32 %v39, %v44
  %v46 = vadd.f32 %v36, %v45
  %47 = vset.pattern.permute.xlu0 3
  %48 = vperm.xlu0 %47, %v14
  %v49 = vpop.permute.xlu0 %48
  %v51 = vlaneseq
  %v52 = vshrl.u32 %v51, 7
  %v53 = vsub.s32 3, %v52
  %v54 = vrot.slane %v15, %v53
  %v55 = vmul.f32 %v49, %v54
  %v56 = vadd.f32 %v46, %v55
  %v58 = vlaneseq
  %v59 = vshrl.u32 %v58, 7
  %v60 = vsub.s32 0, %v59
  %v61 = vrot.slane %v16, %v60
  %v63 = vadd.f32 %v56, %v61
  %v64 = vmax.f32 %v63, 0.0
  %vm65 = vcmask 23552
  %66 = vst.msk [vmem:[%s3] sm:$0xff] %vm65, %v64
  // Predicated region
  $region14: #{ann_linear_forward.1} parent=0 // pred_check
    _
  $region15: #{ann_linear_forward.1} parent=0 // pred_check_branch
    %68 = sbr.rel (0) target = $region17
  $region16: #{ann_linear_forward.1} parent=0 // pred_region
    _
  $region17: #{ann_linear_forward.1} parent=0 // pred_fallthru
    _
  // Predicated region
  $region18: #{ann_linear_forward.1} parent=0 // pred_check
    _
  $region19: #{ann_linear_forward.1} parent=0 // pred_check_branch
    %70 = sbr.rel (0) target = $region21
  $region20: #{ann_linear_forward.1} parent=0 // pred_region
    _
  $region21: #{ann_linear_forward.1} parent=0 // pred_fallthru
    _

</llo_original>
